<compile_context>
chip_gen: v6e
topology: v6e:2x2x1
jax: 0.10.0
libtpu: 0.0.40
codegen_flags: <defaults>
</compile_context>

<pallas_src>
import functools

import jax
import jax.numpy as jnp
from jax.experimental import pallas as pl
from jax.experimental.pallas import tpu as pltpu

HIDDEN = 32   # fc1/fc2 width from the PyTorch module
HP = 128      # lane-padded feature width used inside the kernel


def _round_up(x, m):
    return ((x + m - 1) // m) * m


def _pad2d(a, rows, cols):
    return jnp.pad(a, ((0, rows - a.shape[0]), (0, cols - a.shape[1])))


def pack_params(params, num_inputs):
    """Pack (transposed) weights + biases into one (R, 128) f32 slab.

    Layout (row offsets):
      [0             : ni            )  w1  (ni, 128)   zero-padded cols
      [ni            : ni+1          )  b1  (1, 128)
      [ni+1          : ni+1+HP       )  w2  (128, 128)  zero-padded rows/cols
      [ni+1+HP       : ni+2+HP       )  b2  (1, 128)
      [ni+2+HP       : ni+2+2HP      )  w3  (128, 128)  zero-padded rows/cols
      [ni+2+2HP      : ni+3+2HP      )  b3  (1, 128)
    Zero padding keeps the math exact: padded lanes stay 0 through tanh chains
    and are sliced off at the end.
    """
    w1p = _pad2d(params["w1"], num_inputs, HP)
    b1p = _pad2d(params["b1"], 1, HP)
    w2p = _pad2d(params["w2"], HP, HP)
    b2p = _pad2d(params["b2"], 1, HP)
    w3p = _pad2d(params["w3"], HP, HP)
    b3p = _pad2d(params["b3"], 1, HP)
    slab = jnp.concatenate([w1p, b1p, w2p, b2p, w3p, b3p], axis=0)
    rows = _round_up(slab.shape[0], 8)          # sublane-align the slab
    if rows != slab.shape[0]:
        slab = jnp.pad(slab, ((0, rows - slab.shape[0]), (0, 0)))
    return slab


def _make_kernel(ni):
    o_w1 = 0
    o_b1 = ni
    o_w2 = ni + 1
    o_b2 = ni + 1 + HP
    o_w3 = ni + 2 + HP
    o_b3 = ni + 2 + 2 * HP

    def kernel(x_ref, p_ref, mu_ref):
        x = x_ref[...].astype(jnp.float32)

        # Static slices into the packed parameter slab (zero-cost views).
        w1 = p_ref[o_w1:o_w1 + ni, :]
        b1 = p_ref[o_b1:o_b1 + 1, :]
        w2 = p_ref[o_w2:o_w2 + HP, :]
        b2 = p_ref[o_b2:o_b2 + 1, :]
        w3 = p_ref[o_w3:o_w3 + HP, :]
        b3 = p_ref[o_b3:o_b3 + 1, :]

        h1 = jnp.tanh(jnp.dot(x, w1, preferred_element_type=jnp.float32) + b1)
        h2 = jnp.tanh(jnp.dot(h1, w2, preferred_element_type=jnp.float32) + b2)
        mu = jnp.dot(h2, w3, preferred_element_type=jnp.float32) + b3

        # Lane-dense (TM, 128) store; valid lanes sliced out in the wrapper.
        mu_ref[...] = mu.astype(mu_ref.dtype)

    return kernel


@functools.partial(jax.jit, static_argnames=("tm",))
def trpo_actor_forward(x, params, tm=512):
    """x: (B, num_inputs) float32. params: dict of (in, out) weights + (1, out) biases.

    Returns (mu, std) matching TrpoActor.forward: mu = fc3(tanh(fc2(tanh(fc1(x))))),
    std = exp(zeros_like(mu)) == ones (computed in the wrapper, not the kernel).
    """
    B, ni = x.shape
    num_outputs = params["w3"].shape[1]

    slab = pack_params(params, ni)

    # Batch tiling: TM rows per grid step (clamped for small batches).
    TM = min(tm, _round_up(B, 8))
    B_pad = _round_up(B, TM)
    if B_pad != B:
        x = jnp.pad(x, ((0, B_pad - B), (0, 0)))

    kernel = _make_kernel(ni)

    mu_full = pl.pallas_call(
        kernel,
        out_shape=jax.ShapeDtypeStruct((B_pad, HP), jnp.float32),
        grid=(B_pad // TM,),
        in_specs=[
            # x: tiled along batch; feature dim equals full array dim.
            pl.BlockSpec((TM, ni), lambda i: (i, 0)),
            # packed params: constant index_map -> VMEM-resident across steps.
            pl.BlockSpec(slab.shape, lambda i: (0, 0)),
        ],
        out_specs=pl.BlockSpec((TM, HP), lambda i: (i, 0)),
        compiler_params=pltpu.CompilerParams(
            dimension_semantics=("parallel",),
        ),
    )(x, slab)

    mu = mu_full[:B, :num_outputs]
    # logstd = zeros_like(mu) in the module's forward, so std = exp(0) = 1.
    # TODO(synk): if logstd becomes a learnable parameter, pass it in and
    # compute std = exp(logstd) instead of ones.
    std = jnp.ones_like(mu)
    return mu, std


def init_params(key, num_inputs, num_outputs):
    """Deterministic synthetic init mirroring nn.Linear default (uniform
    +/- 1/sqrt(fan_in)), with fc3 weight scaled by 0.1 and fc3 bias zeroed,
    as in TrpoActor.__init__. Weights stored as (in, out) = PyTorch W.T."""
    ks = jax.random.split(key, 6)

    def linear(kw, kb, fan_in, fan_out):
        bound = 1.0 / jnp.sqrt(fan_in)
        w = jax.random.uniform(kw, (fan_in, fan_out), jnp.float32, -bound, bound)
        b = jax.random.uniform(kb, (1, fan_out), jnp.float32, -bound, bound)
        return w, b

    w1, b1 = linear(ks[0], ks[1], num_inputs, HIDDEN)
    w2, b2 = linear(ks[2], ks[3], HIDDEN, HIDDEN)
    w3, b3 = linear(ks[4], ks[5], HIDDEN, num_outputs)
    w3 = w3 * 0.1          # self.fc3.weight.data.mul_(0.1)
    b3 = b3 * 0.0          # self.fc3.bias.data.mul_(0.0)

    return {"w1": w1, "b1": b1, "w2": w2, "b2": b2, "w3": w3, "b3": b3}


if __name__ == "__main__":
    key = jax.random.PRNGKey(0)
    k_params, k_x = jax.random.split(key)

    batch = 8
    num_inputs = 16
    num_outputs = 8

    params = init_params(k_params, num_inputs, num_outputs)
    x = jax.random.normal(k_x, (batch, num_inputs), jnp.float32)

    mu, std = trpo_actor_forward(x, params)
    jax.block_until_ready((mu, std))

    # sanity: reference in plain JAX
    h1 = jnp.tanh(x @ params["w1"] + params["b1"])
    h2 = jnp.tanh(h1 @ params["w2"] + params["b2"])
    mu_ref = h2 @ params["w3"] + params["b3"]
    assert mu.shape == (batch, num_outputs)
    assert jnp.allclose(mu, mu_ref, atol=1e-5), "mu mismatch"
    assert jnp.allclose(std, jnp.ones_like(mu_ref)), "std mismatch"

    print("KERNEL_OK")
</pallas_src>

<mosaic_0001>
module attributes {stable_mosaic.version = 11 : i64} {
  func.func @kernel(%arg0: i32, %arg1: memref<8x16xf32, #tpu.memory_space<vmem>>, %arg2: memref<280x128xf32, #tpu.memory_space<vmem>>, %arg3: memref<8x128xf32, #tpu.memory_space<vmem>>) attributes {dimension_semantics = [#tpu.dimension_semantics<parallel>], iteration_bounds = array<i64: 1>, scalar_prefetch = 0 : i64, scratch_operands = 0 : i64, tpu.core_type = #tpu.core_type<tc>, window_params = [{transform_indices = @transform_0, window_bounds = array<i64: 8, 16>}, {pipeline_mode = #tpu.pipeline_mode<synchronous>, transform_indices = @transform_1, window_bounds = array<i64: 280, 128>}, {transform_indices = @transform_2, window_bounds = array<i64: 8, 128>}]} {
    %c0 = arith.constant 0 : index
    %c0_0 = arith.constant 0 : index
    %0 = vector.load %arg1[%c0, %c0_0] : memref<8x16xf32, #tpu.memory_space<vmem>>, vector<8x16xf32>
    %c0_1 = arith.constant 0 : index
    %c0_2 = arith.constant 0 : index
    %1 = vector.load %arg2[%c0_1, %c0_2] : memref<280x128xf32, #tpu.memory_space<vmem>>, vector<16x128xf32>
    %c16 = arith.constant 16 : index
    %c0_3 = arith.constant 0 : index
    %2 = vector.load %arg2[%c16, %c0_3] : memref<280x128xf32, #tpu.memory_space<vmem>>, vector<1x128xf32>
    %c17 = arith.constant 17 : index
    %c0_4 = arith.constant 0 : index
    %3 = vector.load %arg2[%c17, %c0_4] : memref<280x128xf32, #tpu.memory_space<vmem>>, vector<128x128xf32>
    %c145 = arith.constant 145 : index
    %c0_5 = arith.constant 0 : index
    %4 = vector.load %arg2[%c145, %c0_5] : memref<280x128xf32, #tpu.memory_space<vmem>>, vector<1x128xf32>
    %c146 = arith.constant 146 : index
    %c0_6 = arith.constant 0 : index
    %5 = vector.load %arg2[%c146, %c0_6] : memref<280x128xf32, #tpu.memory_space<vmem>>, vector<128x128xf32>
    %c274 = arith.constant 274 : index
    %c0_7 = arith.constant 0 : index
    %6 = vector.load %arg2[%c274, %c0_7] : memref<280x128xf32, #tpu.memory_space<vmem>>, vector<1x128xf32>
    %cst = arith.constant dense<0.000000e+00> : vector<8x128xf32>
    %7 = tpu.matmul %0, %1, %cst {dimension_numbers = #tpu.dot_dimension_numbers<[1], [0], [0], [1], [0, 0, 1, 1], [], []>} : vector<8x16xf32>, vector<16x128xf32>, vector<8x128xf32> -> vector<8x128xf32>
    %8 = vector.broadcast %2 : vector<1x128xf32> to vector<8x128xf32>
    %9 = arith.addf %7, %8 : vector<8x128xf32>
    %10 = math.tanh %9 : vector<8x128xf32>
    %cst_8 = arith.constant dense<0.000000e+00> : vector<8x128xf32>
    %11 = tpu.matmul %10, %3, %cst_8 {dimension_numbers = #tpu.dot_dimension_numbers<[1], [0], [0], [1], [0, 0, 1, 1], [], []>} : vector<8x128xf32>, vector<128x128xf32>, vector<8x128xf32> -> vector<8x128xf32>
    %12 = vector.broadcast %4 : vector<1x128xf32> to vector<8x128xf32>
    %13 = arith.addf %11, %12 : vector<8x128xf32>
    %14 = math.tanh %13 : vector<8x128xf32>
    %cst_9 = arith.constant dense<0.000000e+00> : vector<8x128xf32>
    %15 = tpu.matmul %14, %5, %cst_9 {dimension_numbers = #tpu.dot_dimension_numbers<[1], [0], [0], [1], [0, 0, 1, 1], [], []>} : vector<8x128xf32>, vector<128x128xf32>, vector<8x128xf32> -> vector<8x128xf32>
    %16 = vector.broadcast %6 : vector<1x128xf32> to vector<8x128xf32>
    %17 = arith.addf %15, %16 : vector<8x128xf32>
    %c0_10 = arith.constant 0 : index
    %c0_11 = arith.constant 0 : index
    %18 = vector.load %arg3[%c0_10, %c0_11] : memref<8x128xf32, #tpu.memory_space<vmem>>, vector<8x128xf32>
    tpu.vector_store %arg3[%c0_10, %c0_11], %17 {strides = array<i32>} : memref<8x128xf32, #tpu.memory_space<vmem>>, vector<8x128xf32>,
    return
  }
  func.func @transform_0(%arg0: i32) -> (i32, i32) {
    %c0_i32 = arith.constant 0 : i32
    %c0_i32_0 = arith.constant 0 : i32
    return %arg0, %c0_i32 : i32, i32
  }
  func.func @transform_1(%arg0: i32) -> (i32, i32) {
    %c0_i32 = arith.constant 0 : i32
    %c0_i32_0 = arith.constant 0 : i32
    %c0_i32_1 = arith.constant 0 : i32
    return %c0_i32, %c0_i32_0 : i32, i32
  }
  func.func @transform_2(%arg0: i32) -> (i32, i32) {
    %c0_i32 = arith.constant 0 : i32
    %c0_i32_0 = arith.constant 0 : i32
    return %arg0, %c0_i32 : i32, i32
  }
}

</mosaic_0001>

<llo_original>
// kernel: trpo_actor_forward.1
$region0: #{trpo_actor_forward.1}
  #allocation0 [shape = 'u32[]', space=smem, size = 0x4, offset = 0x4, fixed_abs, tag = 'smem constant byte address 0x4 - core index']
  #allocation1 [shape = 'u32[144,128]{1,0:T(1,128)}', space=vmem, size = 0x12000, scoped, tag = 'internal scratch']
  %s0 = inlined_call_operand.vmem [shape: f32[8,16], index: 0, kind: input, shape index: {}]
  %s1 = inlined_call_operand.vmem [shape: f32[280,128], index: 1, kind: input, shape index: {}]
  %s2 = inlined_call_operand.hbm [shape: f32[8,128], index: 2, kind: output, shape index: {}]
  %s3 = sld [smem:[#allocation0]]
  $region18: #{trpo_actor_forward.1} parent=0
    _
  %s5 = ssub.s32 1, %s3
  %s6 = scalar_select 0, %s5, %s3
  $region1: #{trpo_actor_forward.1} parent=0
    #allocation2 [shape = 'u8[4096]{0}', space=vmem, size = 0x1000, scoped, tag = 'output window, operand 0, single buffered']
    #allocation3 [shape = 's32[1]{0}', space=sflag, size = 0x4, scoped, tag = 'scoped memory for trpo_actor_forward.1']
    %7 = vsyncpa [#allocation3], 0
    // Predicated region
    $region2: #{trpo_actor_forward.1} parent=1 // pred_check
      _
    $region3: #{trpo_actor_forward.1} parent=1 // pred_check_branch
      %9 = sbr.rel (0) target = $region5
    $region4: #{trpo_actor_forward.1} parent=1 // pred_region
      _
    $region5: #{trpo_actor_forward.1} parent=1 // pred_fallthru
      _
    // Predicated region
    $region6: #{trpo_actor_forward.1} parent=1 // pred_check
      _
    $region7: #{trpo_actor_forward.1} parent=1 // pred_check_branch
      %11 = sbr.rel (0) target = $region9
    $region8: #{trpo_actor_forward.1} parent=1 // pred_region
      _
    $region9: #{trpo_actor_forward.1} parent=1 // pred_fallthru
      _
    %v12 = vld [vmem:[%s0] sm:$0xff]
    %v13 = vld [vmem:[%s1] sm:$0xff]
    %v14 = vld [vmem:[%s1 + $0x8] sm:$0xff]
    %v15 = vld [vmem:[%s1 + $0x10] sm:$0x1]
    %v16 = vld [vmem:[%s1 + $0x11] sm:$0xff]
    %v17 = vld [vmem:[%s1 + $0x19] sm:$0xff]
    %v18 = vld [vmem:[%s1 + $0x21] sm:$0xff]
    %v19 = vld [vmem:[%s1 + $0x29] sm:$0xff]
    %v20 = vld [vmem:[%s1 + $0x31] sm:$0xff]
    %v21 = vld [vmem:[%s1 + $0x39] sm:$0xff]
    %v22 = vld [vmem:[%s1 + $0x41] sm:$0xff]
    %v23 = vld [vmem:[%s1 + $0x49] sm:$0xff]
    %v24 = vld [vmem:[%s1 + $0x51] sm:$0xff]
    %v25 = vld [vmem:[%s1 + $0x59] sm:$0xff]
    %v26 = vld [vmem:[%s1 + $0x61] sm:$0xff]
    %v27 = vld [vmem:[%s1 + $0x69] sm:$0xff]
    %v28 = vld [vmem:[%s1 + $0x71] sm:$0xff]
    %v29 = vld [vmem:[%s1 + $0x79] sm:$0xff]
    %v30 = vld [vmem:[%s1 + $0x81] sm:$0xff]
    %v31 = vld [vmem:[%s1 + $0x89] sm:$0xff]
    %v32 = vld [vmem:[%s1 + $0x91] sm:$0x1]
    %v33 = vld [vmem:[%s1 + $0x92] sm:$0xff]
    %v34 = vld [vmem:[%s1 + $0x9a] sm:$0xff]
    %v35 = vld [vmem:[%s1 + $0xa2] sm:$0xff]
    %v36 = vld [vmem:[%s1 + $0xaa] sm:$0xff]
    %v37 = vld [vmem:[%s1 + $0xb2] sm:$0xff]
    %v38 = vld [vmem:[%s1 + $0xba] sm:$0xff]
    %v39 = vld [vmem:[%s1 + $0xc2] sm:$0xff]
    %v40 = vld [vmem:[%s1 + $0xca] sm:$0xff]
    %v41 = vld [vmem:[%s1 + $0xd2] sm:$0xff]
    %v42 = vld [vmem:[%s1 + $0xda] sm:$0xff]
    %v43 = vld [vmem:[%s1 + $0xe2] sm:$0xff]
    %v44 = vld [vmem:[%s1 + $0xea] sm:$0xff]
    %v45 = vld [vmem:[%s1 + $0xf2] sm:$0xff]
    %v46 = vld [vmem:[%s1 + $0xfa] sm:$0xff]
    %v47 = vld [vmem:[%s1 + $0x102] sm:$0xff]
    %v48 = vld [vmem:[%s1 + $0x10a] sm:$0xff]
    %v49 = vld [vmem:[%s1 + $0x112] sm:$0x1]
    %v50 = vlaneseq
    %v51 = vshrl.u32 %v50, 7
    %v52 = vsub.s32 0, %v51
    %v53 = vrot.slane %v15, %v52
    %vm54 = vcmask 130048
    %v56 = vsel %vm54, %v12, 0
    %58 = vmatprep.subr.mxu0 0.0
    %59 = vmatpush1.msra.mxu0 0.0
    %60 = vmatprep.subr.mxu0 0.0
    %61 = vmatpush1.msra.mxu0 0.0
    %62 = vmatprep.subr.mxu0 0.0
    %63 = vmatpush1.msra.mxu0 0.0
    %64 = vmatprep.subr.mxu0 0.0
    %65 = vmatpush1.msra.mxu0 0.0
    %66 = vmatprep.subr.mxu0 0.0
    %67 = vmatpush1.msra.mxu0 0.0
    %68 = vmatprep.subr.mxu0 0.0
    %69 = vmatpush1.msra.mxu0 0.0
    %70 = vmatprep.subr.mxu0 0.0
    %71 = vmatpush1.msra.mxu0 0.0
    %72 = vmatprep.subr.mxu0 0.0
    %73 = vmatpush1.msra.mxu0 0.0
    %74 = vmatprep.subr.mxu0 0.0
    %75 = vmatpush1.msra.mxu0 0.0
    %76 = vmatprep.subr.mxu0 0.0
    %77 = vmatpush1.msra.mxu0 0.0
    %78 = vmatprep.subr.mxu0 0.0
    %79 = vmatpush1.msra.mxu0 0.0
    %80 = vmatprep.subr.mxu0 0.0
    %81 = vmatpush1.msra.mxu0 0.0
    %82 = vmatprep.subr.mxu0 0.0
    %83 = vmatpush1.msra.mxu0 0.0
    %84 = vmatprep.subr.mxu0 0.0
    %85 = vmatpush1.msra.mxu0 0.0
    %86 = vmatprep.subr.mxu0 0.0
    %87 = vmatpush1.msra.mxu0 %v14
    %88 = vmatprep.subr.mxu0 0.0
    %89 = vmatpush1.msra.mxu0 %v13
    %90 = vmatprep.subr.mxu0 0.0
    %91 = vmatpush2.msra.mxu0 0.0
    %92 = vmatprep.subr.mxu0 0.0
    %93 = vmatpush2.msra.mxu0 0.0
    %94 = vmatprep.subr.mxu0 0.0
    %95 = vmatpush2.msra.mxu0 0.0
    %96 = vmatprep.subr.mxu0 0.0
    %97 = vmatpush2.msra.mxu0 0.0
    %98 = vmatprep.subr.mxu0 0.0
    %99 = vmatpush2.msra.mxu0 0.0
    %100 = vmatprep.subr.mxu0 0.0
    %101 = vmatpush2.msra.mxu0 0.0
    %102 = vmatprep.subr.mxu0 0.0
    %103 = vmatpush2.msra.mxu0 0.0
    %104 = vmatprep.subr.mxu0 0.0
    %105 = vmatpush2.msra.mxu0 0.0
    %106 = vmatprep.subr.mxu0 0.0
    %107 = vmatpush2.msra.mxu0 0.0
    %108 = vmatprep.subr.mxu0 0.0
    %109 = vmatpush2.msra.mxu0 0.0
    %110 = vmatprep.subr.mxu0 0.0
    %111 = vmatpush2.msra.mxu0 0.0
    %112 = vmatprep.subr.mxu0 0.0
    %113 = vmatpush2.msra.mxu0 0.0
    %114 = vmatprep.subr.mxu0 0.0
    %115 = vmatpush2.msra.mxu0 0.0
    %116 = vmatprep.subr.mxu0 0.0
    %117 = vmatpush2.msra.mxu0 0.0
    %118 = vmatprep.subr.mxu0 0.0
    %119 = vmatpush2.msra.mxu0 0.0
    %120 = vmatprep.subr.mxu0 0.0
    %121 = vmatpush2.msra.mxu0 0.0
    %122 = vmatprep.mubr.f32.mxu0 0.0
    %123 = vmatmul.mubr.f32.gmra.mxu0 %v56
    %v124 = vpop.f32.mrf.mxu0
    %v125 = vadd.f32 %v53, %v124
    %v126 = vpop.f32.mrf.mxu0
    %127 = vdwg.mxu0
    %v128 = vtanh.pop %v125
    %v129 = vlaneseq
    %v130 = vshrl.u32 %v129, 7
    %v131 = vsub.s32 0, %v130
    %v132 = vrot.slane %v32, %v131
    %133 = vmatprep.subr.mxu0 0.0
    %134 = vmatpush1.msra.mxu0 %v31
    %135 = vmatprep.subr.mxu0 0.0
    %136 = vmatpush1.msra.mxu0 %v30
    %137 = vmatprep.subr.mxu0 0.0
    %138 = vmatpush1.msra.mxu0 %v29
    %139 = vmatprep.subr.mxu0 0.0
    %140 = vmatpush1.msra.mxu0 %v28
    %141 = vmatprep.subr.mxu0 0.0
    %142 = vmatpush1.msra.mxu0 %v27
    %143 = vmatprep.subr.mxu0 0.0
    %144 = vmatpush1.msra.mxu0 %v26
    %145 = vmatprep.subr.mxu0 0.0
    %146 = vmatpush1.msra.mxu0 %v25
    %147 = vmatprep.subr.mxu0 0.0
    %148 = vmatpush1.msra.mxu0 %v24
    %149 = vmatprep.subr.mxu0 0.0
    %150 = vmatpush1.msra.mxu0 %v23
    %151 = vmatprep.subr.mxu0 0.0
    %152 = vmatpush1.msra.mxu0 %v22
    %153 = vmatprep.subr.mxu0 0.0
    %154 = vmatpush1.msra.mxu0 %v21
    %155 = vmatprep.subr.mxu0 0.0
    %156 = vmatpush1.msra.mxu0 %v20
    %157 = vmatprep.subr.mxu0 0.0
    %158 = vmatpush1.msra.mxu0 %v19
    %159 = vmatprep.subr.mxu0 0.0
    %160 = vmatpush1.msra.mxu0 %v18
    %161 = vmatprep.subr.mxu0 0.0
    %162 = vmatpush1.msra.mxu0 %v17
    %163 = vmatprep.subr.mxu0 0.0
    %164 = vmatpush1.msra.mxu0 %v16
    %165 = vmatprep.subr.mxu0 0.0
    %166 = vmatpush2.msra.mxu0 0.0
    %167 = vmatprep.subr.mxu0 0.0
    %168 = vmatpush2.msra.mxu0 0.0
    %169 = vmatprep.subr.mxu0 0.0
    %170 = vmatpush2.msra.mxu0 0.0
    %171 = vmatprep.subr.mxu0 0.0
    %172 = vmatpush2.msra.mxu0 0.0
    %173 = vmatprep.subr.mxu0 0.0
    %174 = vmatpush2.msra.mxu0 0.0
    %175 = vmatprep.subr.mxu0 0.0
    %176 = vmatpush2.msra.mxu0 0.0
    %177 = vmatprep.subr.mxu0 0.0
    %178 = vmatpush2.msra.mxu0 0.0
    %179 = vmatprep.subr.mxu0 0.0
    %180 = vmatpush2.msra.mxu0 0.0
    %181 = vmatprep.subr.mxu0 0.0
    %182 = vmatpush2.msra.mxu0 0.0
    %183 = vmatprep.subr.mxu0 0.0
    %184 = vmatpush2.msra.mxu0 0.0
    %185 = vmatprep.subr.mxu0 0.0
    %186 = vmatpush2.msra.mxu0 0.0
    %187 = vmatprep.subr.mxu0 0.0
    %188 = vmatpush2.msra.mxu0 0.0
    %189 = vmatprep.subr.mxu0 0.0
    %190 = vmatpush2.msra.mxu0 0.0
    %191 = vmatprep.subr.mxu0 0.0
    %192 = vmatpush2.msra.mxu0 0.0
    %193 = vmatprep.subr.mxu0 0.0
    %194 = vmatpush2.msra.mxu0 0.0
    %195 = vmatprep.subr.mxu0 0.0
    %196 = vmatpush2.msra.mxu0 0.0
    %197 = vmatprep.mubr.f32.mxu0 0.0
    %198 = vmatmul.mubr.f32.gmra.mxu0 %v128
    %v199 = vpop.f32.mrf.mxu0
    %v200 = vadd.f32 %v132, %v199
    %v201 = vpop.f32.mrf.mxu0
    %202 = vdwg.mxu0
    %v203 = vtanh.pop %v200
    %v204 = vlaneseq
    %v205 = vshrl.u32 %v204, 7
    %v206 = vsub.s32 0, %v205
    %v207 = vrot.slane %v49, %v206
    %208 = vmatprep.subr.mxu0 0.0
    %209 = vmatpush1.msra.mxu0 %v48
    %210 = vmatprep.subr.mxu0 0.0
    %211 = vmatpush1.msra.mxu0 %v47
    %212 = vmatprep.subr.mxu0 0.0
    %213 = vmatpush1.msra.mxu0 %v46
    %214 = vmatprep.subr.mxu0 0.0
    %215 = vmatpush1.msra.mxu0 %v45
    %216 = vmatprep.subr.mxu0 0.0
    %217 = vmatpush1.msra.mxu0 %v44
    %218 = vmatprep.subr.mxu0 0.0
    %219 = vmatpush1.msra.mxu0 %v43
    %220 = vmatprep.subr.mxu0 0.0
    %221 = vmatpush1.msra.mxu0 %v42
    %222 = vmatprep.subr.mxu0 0.0
    %223 = vmatpush1.msra.mxu0 %v41
    %224 = vmatprep.subr.mxu0 0.0
    %225 = vmatpush1.msra.mxu0 %v40
    %226 = vmatprep.subr.mxu0 0.0
    %227 = vmatpush1.msra.mxu0 %v39
    %228 = vmatprep.subr.mxu0 0.0
    %229 = vmatpush1.msra.mxu0 %v38
    %230 = vmatprep.subr.mxu0 0.0
    %231 = vmatpush1.msra.mxu0 %v37
    %232 = vmatprep.subr.mxu0 0.0
    %233 = vmatpush1.msra.mxu0 %v36
    %234 = vmatprep.subr.mxu0 0.0
    %235 = vmatpush1.msra.mxu0 %v35
    %236 = vmatprep.subr.mxu0 0.0
    %237 = vmatpush1.msra.mxu0 %v34
    %238 = vmatprep.subr.mxu0 0.0
    %239 = vmatpush1.msra.mxu0 %v33
    %240 = vmatprep.subr.mxu0 0.0
    %241 = vmatpush2.msra.mxu0 0.0
    %242 = vmatprep.subr.mxu0 0.0
    %243 = vmatpush2.msra.mxu0 0.0
    %244 = vmatprep.subr.mxu0 0.0
    %245 = vmatpush2.msra.mxu0 0.0
    %246 = vmatprep.subr.mxu0 0.0
    %247 = vmatpush2.msra.mxu0 0.0
    %248 = vmatprep.subr.mxu0 0.0
    %249 = vmatpush2.msra.mxu0 0.0
    %250 = vmatprep.subr.mxu0 0.0
    %251 = vmatpush2.msra.mxu0 0.0
    %252 = vmatprep.subr.mxu0 0.0
    %253 = vmatpush2.msra.mxu0 0.0
    %254 = vmatprep.subr.mxu0 0.0
    %255 = vmatpush2.msra.mxu0 0.0
    %256 = vmatprep.subr.mxu0 0.0
    %257 = vmatpush2.msra.mxu0 0.0
    %258 = vmatprep.subr.mxu0 0.0
    %259 = vmatpush2.msra.mxu0 0.0
    %260 = vmatprep.subr.mxu0 0.0
    %261 = vmatpush2.msra.mxu0 0.0
    %262 = vmatprep.subr.mxu0 0.0
    %263 = vmatpush2.msra.mxu0 0.0
    %264 = vmatprep.subr.mxu0 0.0
    %265 = vmatpush2.msra.mxu0 0.0
    %266 = vmatprep.subr.mxu0 0.0
    %267 = vmatpush2.msra.mxu0 0.0
    %268 = vmatprep.subr.mxu0 0.0
    %269 = vmatpush2.msra.mxu0 0.0
    %270 = vmatprep.subr.mxu0 0.0
    %271 = vmatpush2.msra.mxu0 0.0
    %272 = vmatprep.mubr.f32.mxu0 0.0
    %273 = vmatmul.mubr.f32.gmra.mxu0 %v203
    %v274 = vpop.f32.mrf.mxu0
    %v275 = vadd.f32 %v207, %v274
    %v276 = vpop.f32.mrf.mxu0
    %277 = vdwg.mxu0
    %278 = vst [vmem:[#allocation2] sm:$0xff] %v275
    // Predicated region
    $region10: #{trpo_actor_forward.1} parent=1 // pred_check
      _
    $region11: #{trpo_actor_forward.1} parent=1 // pred_check_branch
      %280 = sbr.rel (0) target = $region13
    $region12: #{trpo_actor_forward.1} parent=1 // pred_region
      %s282 = ssub.s32 128, 128
      %283 = vsyncadd [#allocation3], %s282
      %s285 = sshll.u32 [#allocation2], 4
      %s286 = int_to_ptr.vmem [resolvable:$true] %s285
      %288 = dma.vmem_to_hbm [thread:$0]  %s286, 128, %s2, [#allocation3]
    $region13: #{trpo_actor_forward.1} parent=1 // pred_fallthru
      _
    // Predicated region
    $region14: #{trpo_actor_forward.1} parent=1 // pred_check
      _
    $region15: #{trpo_actor_forward.1} parent=1 // pred_check_branch
      %290 = sbr.rel (0) target = $region17
    $region16: #{trpo_actor_forward.1} parent=1 // pred_region
      %291 = dma.done [#allocation3], 128
    $region17: #{trpo_actor_forward.1} parent=1 // pred_fallthru
      _
    %292 = vsyncpa [#allocation3], 1

</llo_original>
